<compile_context>
chip_gen: v6e
topology: v6e:2x2x1
jax: 0.10.0
libtpu: 0.0.40
codegen_flags: <defaults>
</compile_context>

<pallas_src>
import functools

import jax
import jax.numpy as jnp
from jax.experimental import pallas as pl
from jax.experimental.pallas import tpu as pltpu

NINF = -100.0        # matches `nINF` in the PyTorch reference
NEG_INIT = -1e30     # running-max init for the online logsumexp


def _softplus(z):
    # Numerically stable softplus (uses only exp/log, which lower cleanly).
    return jnp.maximum(z, 0.0) + jnp.log(1.0 + jnp.exp(-jnp.abs(z)))


def _two_way_loss_kernel(x_ref, y_ref, out_ref,
                         mp_ref, sp_ref, mn_ref, sn_ref, cls_any_ref,
                         samp_sum_ref, samp_cnt_ref, *, tp, tn):
    step = pl.program_id(0)
    nsteps = pl.num_programs(0)

    @pl.when(step == 0)
    def _init():
        mp_ref[...] = jnp.full(mp_ref.shape, NEG_INIT, jnp.float32)
        mn_ref[...] = jnp.full(mn_ref.shape, NEG_INIT, jnp.float32)
        sp_ref[...] = jnp.zeros(sp_ref.shape, jnp.float32)
        sn_ref[...] = jnp.zeros(sn_ref.shape, jnp.float32)
        cls_any_ref[...] = jnp.zeros(cls_any_ref.shape, jnp.float32)
        samp_sum_ref[...] = jnp.zeros(samp_sum_ref.shape, jnp.float32)
        samp_cnt_ref[...] = jnp.zeros(samp_cnt_ref.shape, jnp.float32)

    x = x_ref[...].astype(jnp.float32)           # [TB, C]
    y = y_ref[...].astype(jnp.float32)           # [TB, C]

    pos = y > 0.0
    pos_f = pos.astype(jnp.float32)
    pmask = jnp.where(pos, 0.0, NINF)            # 0 at positives, -100 elsewhere
    nmask = jnp.where(y == 0.0, 0.0, NINF)       # 0 at exact zeros, -100 elsewhere

    # Multiply by compile-time reciprocals instead of per-element divides.
    zp = -x * (1.0 / tp) + pmask                 # [TB, C]
    zn = x * (1.0 / tn) + nmask                  # [TB, C]

    # ---- per-class terms (reduce over batch): online logsumexp accumulation ----
    tile_mp = jnp.max(zp, axis=0, keepdims=True)                   # [1, C]
    new_mp = jnp.maximum(mp_ref[...], tile_mp)
    sp_ref[...] = (sp_ref[...] * jnp.exp(mp_ref[...] - new_mp)
                   + jnp.sum(jnp.exp(zp - new_mp), axis=0, keepdims=True))
    mp_ref[...] = new_mp

    tile_mn = jnp.max(zn, axis=0, keepdims=True)                   # [1, C]
    new_mn = jnp.maximum(mn_ref[...], tile_mn)
    sn_ref[...] = (sn_ref[...] * jnp.exp(mn_ref[...] - new_mn)
                   + jnp.sum(jnp.exp(zn - new_mn), axis=0, keepdims=True))
    mn_ref[...] = new_mn

    # class_mask = (y > 0).any(dim=0), accumulated as a running OR (max).
    cls_any_ref[...] = jnp.maximum(cls_any_ref[...],
                                   jnp.max(pos_f, axis=0, keepdims=True))

    # ---- per-sample terms (reduce over classes): rows are tile-local ----
    mp_row = jnp.max(zp, axis=1, keepdims=True)                    # [TB, 1]
    p_samp = tp * (mp_row + jnp.log(jnp.sum(jnp.exp(zp - mp_row),
                                            axis=1, keepdims=True)))
    mn_row = jnp.max(zn, axis=1, keepdims=True)                    # [TB, 1]
    n_samp = tn * (mn_row + jnp.log(jnp.sum(jnp.exp(zn - mn_row),
                                            axis=1, keepdims=True)))
    row_mask = jnp.max(pos_f, axis=1, keepdims=True)               # sample_mask
    samp_sum_ref[...] += row_mask * _softplus(n_samp + p_samp)
    samp_cnt_ref[...] += row_mask

    # ---- finalize on the last batch tile ----
    @pl.when(step == nsteps - 1)
    def _finalize():
        plogit_c = tp * (mp_ref[...] + jnp.log(sp_ref[...]))       # [1, C]
        nlogit_c = tn * (mn_ref[...] + jnp.log(sn_ref[...]))       # [1, C]
        cmask = cls_any_ref[...]                                   # [1, C]
        cls_num = jnp.sum(cmask * _softplus(nlogit_c + plogit_c),
                          axis=1, keepdims=True)                   # [1, 1]
        cls_den = jnp.sum(cmask, axis=1, keepdims=True)            # [1, 1]
        samp_num = jnp.sum(samp_sum_ref[...], axis=0, keepdims=True)
        samp_den = jnp.sum(samp_cnt_ref[...], axis=0, keepdims=True)
        out_ref[...] = cls_num / cls_den + samp_num / samp_den     # (1,1) block store


def _pick_block_b(B, C, vmem_budget_bytes=8 * 1024 * 1024):
    """Largest batch tile (multiple of 8, divisor of B) fitting the budget."""
    bytes_per_row = 2 * 2 * C * 4          # 2 inputs x double-buffer x C f32
    max_rows = max(8, vmem_budget_bytes // max(bytes_per_row, 1))
    for cand in (1024, 512, 256, 128, 64, 32, 16, 8):
        if cand <= max_rows and B % cand == 0:
            return cand
    return B                               # fallback: full batch in one block


def two_way_loss(x, y, Tp=4.0, Tn=1.0, block_b=None):
    """TwoWayLoss forward. x, y: [B, C] arrays. Returns scalar f32."""
    B, C = x.shape
    if (block_b is None or B % block_b != 0
            or (block_b % 8 != 0 and block_b != B)):
        block_b = _pick_block_b(B, C)
    grid = (B // block_b,)

    kernel = functools.partial(_two_way_loss_kernel,
                               tp=float(Tp), tn=float(Tn))
    out = pl.pallas_call(
        kernel,
        out_shape=jax.ShapeDtypeStruct((1, 1), jnp.float32),
        grid_spec=pltpu.PrefetchScalarGridSpec(
            num_scalar_prefetch=0,
            grid=grid,
            in_specs=[
                pl.BlockSpec((block_b, C), lambda i: (i, 0)),   # x
                pl.BlockSpec((block_b, C), lambda i: (i, 0)),   # y
            ],
            out_specs=pl.BlockSpec((1, 1), lambda i: (0, 0)),
            scratch_shapes=[
                pltpu.VMEM((1, C), jnp.float32),        # mp: running max (pos)
                pltpu.VMEM((1, C), jnp.float32),        # sp: running sum-exp (pos)
                pltpu.VMEM((1, C), jnp.float32),        # mn: running max (neg)
                pltpu.VMEM((1, C), jnp.float32),        # sn: running sum-exp (neg)
                pltpu.VMEM((1, C), jnp.float32),        # class_mask accumulator
                pltpu.VMEM((block_b, 1), jnp.float32),  # per-row loss partial sums
                pltpu.VMEM((block_b, 1), jnp.float32),  # per-row mask counts
            ],
        ),
        compiler_params=pltpu.CompilerParams(
            dimension_semantics=("arbitrary",)),
    )(x, y)
    return out[0, 0]


def two_way_loss_ref(x, y, Tp=4.0, Tn=1.0):
    """Pure-JAX reference mirroring the PyTorch module."""
    class_mask = jnp.any(y > 0, axis=0)
    sample_mask = jnp.any(y > 0, axis=1)
    pmask = jnp.where(y > 0, 0.0, NINF)
    nmask = jnp.where(y == 0, 0.0, NINF)
    plogit_class = jax.scipy.special.logsumexp(-x / Tp + pmask, axis=0) * Tp
    plogit_sample = jax.scipy.special.logsumexp(-x / Tp + pmask, axis=1) * Tp
    nlogit_class = jax.scipy.special.logsumexp(x / Tn + nmask, axis=0) * Tn
    nlogit_sample = jax.scipy.special.logsumexp(x / Tn + nmask, axis=1) * Tn
    cls = jax.nn.softplus(nlogit_class + plogit_class)
    smp = jax.nn.softplus(nlogit_sample + plogit_sample)
    cls_term = jnp.sum(jnp.where(class_mask, cls, 0.0)) / jnp.sum(class_mask)
    smp_term = jnp.sum(jnp.where(sample_mask, smp, 0.0)) / jnp.sum(sample_mask)
    return cls_term + smp_term


if __name__ == "__main__":
    key = jax.random.PRNGKey(0)
    k1, k2 = jax.random.split(key)

    B, C = 32, 24   # small multi-label problem; block_b=8 -> grid=(4,)
    x = jax.random.normal(k1, (B, C), dtype=jnp.float32)
    y = (jax.random.uniform(k2, (B, C)) < 0.3).astype(jnp.float32)
    y = y.at[0, 0].set(1.0)   # guarantee non-empty class/sample masks

    loss = two_way_loss(x, y, Tp=4.0, Tn=1.0, block_b=8)
    jax.block_until_ready(loss)

    ref = two_way_loss_ref(x, y, Tp=4.0, Tn=1.0)
    assert bool(jnp.isfinite(loss)), "non-finite loss"
    assert bool(jnp.allclose(loss, ref, rtol=1e-4, atol=1e-4)), (loss, ref)
    print("KERNEL_OK")
</pallas_src>

<mosaic_0001>
module attributes {stable_mosaic.version = 11 : i64} {
  func.func @_two_way_loss_kernel(%arg0: i32, %arg1: memref<8x24xf32, #tpu.memory_space<vmem>>, %arg2: memref<8x24xf32, #tpu.memory_space<vmem>>, %arg3: memref<1x1xf32, #tpu.memory_space<vmem>>, %arg4: memref<1x24xf32, #tpu.memory_space<vmem>>, %arg5: memref<1x24xf32, #tpu.memory_space<vmem>>, %arg6: memref<1x24xf32, #tpu.memory_space<vmem>>, %arg7: memref<1x24xf32, #tpu.memory_space<vmem>>, %arg8: memref<1x24xf32, #tpu.memory_space<vmem>>, %arg9: memref<8x1xf32, #tpu.memory_space<vmem>>, %arg10: memref<8x1xf32, #tpu.memory_space<vmem>>) attributes {dimension_semantics = [#tpu.dimension_semantics<arbitrary>], iteration_bounds = array<i64: 4>, scalar_prefetch = 0 : i64, scratch_operands = 7 : i64, tpu.core_type = #tpu.core_type<tc>, window_params = [{transform_indices = @transform_0, window_bounds = array<i64: 8, 24>}, {transform_indices = @transform_1, window_bounds = array<i64: 8, 24>}, {pipeline_mode = #tpu.pipeline_mode<synchronous>, transform_indices = @transform_2, window_bounds = array<i64: 1, 1>}]} {
    %c0_i32 = arith.constant 0 : i32
    %0 = arith.cmpi eq, %arg0, %c0_i32 : i32
    %1 = arith.extui %0 : i1 to i32
    %c0_i32_0 = arith.constant 0 : i32
    %2 = arith.cmpi ne, %1, %c0_i32_0 : i32
    scf.if %2 {
      %cst_60 = arith.constant -1.000000e+30 : f32
      %109 = vector.broadcast %cst_60 : f32 to vector<1x24xf32>
      %c0_61 = arith.constant 0 : index
      %c0_62 = arith.constant 0 : index
      %110 = vector.load %arg4[%c0_61, %c0_62] : memref<1x24xf32, #tpu.memory_space<vmem>>, vector<1x24xf32>
      tpu.vector_store %arg4[%c0_61, %c0_62], %109 {strides = array<i32>} : memref<1x24xf32, #tpu.memory_space<vmem>>, vector<1x24xf32>,
      %cst_63 = arith.constant -1.000000e+30 : f32
      %111 = vector.broadcast %cst_63 : f32 to vector<1x24xf32>
      %c0_64 = arith.constant 0 : index
      %c0_65 = arith.constant 0 : index
      %112 = vector.load %arg6[%c0_64, %c0_65] : memref<1x24xf32, #tpu.memory_space<vmem>>, vector<1x24xf32>
      tpu.vector_store %arg6[%c0_64, %c0_65], %111 {strides = array<i32>} : memref<1x24xf32, #tpu.memory_space<vmem>>, vector<1x24xf32>,
      %cst_66 = arith.constant 0.000000e+00 : f32
      %113 = vector.broadcast %cst_66 : f32 to vector<1x24xf32>
      %c0_67 = arith.constant 0 : index
      %c0_68 = arith.constant 0 : index
      %114 = vector.load %arg5[%c0_67, %c0_68] : memref<1x24xf32, #tpu.memory_space<vmem>>, vector<1x24xf32>
      tpu.vector_store %arg5[%c0_67, %c0_68], %113 {strides = array<i32>} : memref<1x24xf32, #tpu.memory_space<vmem>>, vector<1x24xf32>,
      %cst_69 = arith.constant 0.000000e+00 : f32
      %115 = vector.broadcast %cst_69 : f32 to vector<1x24xf32>
      %c0_70 = arith.constant 0 : index
      %c0_71 = arith.constant 0 : index
      %116 = vector.load %arg7[%c0_70, %c0_71] : memref<1x24xf32, #tpu.memory_space<vmem>>, vector<1x24xf32>
      tpu.vector_store %arg7[%c0_70, %c0_71], %115 {strides = array<i32>} : memref<1x24xf32, #tpu.memory_space<vmem>>, vector<1x24xf32>,
      %cst_72 = arith.constant 0.000000e+00 : f32
      %117 = vector.broadcast %cst_72 : f32 to vector<1x24xf32>
      %c0_73 = arith.constant 0 : index
      %c0_74 = arith.constant 0 : index
      %118 = vector.load %arg8[%c0_73, %c0_74] : memref<1x24xf32, #tpu.memory_space<vmem>>, vector<1x24xf32>
      tpu.vector_store %arg8[%c0_73, %c0_74], %117 {strides = array<i32>} : memref<1x24xf32, #tpu.memory_space<vmem>>, vector<1x24xf32>,
      %cst_75 = arith.constant 0.000000e+00 : f32
      %119 = vector.broadcast %cst_75 : f32 to vector<8x1xf32>
      %c0_76 = arith.constant 0 : index
      %c0_77 = arith.constant 0 : index
      %120 = vector.load %arg9[%c0_76, %c0_77] : memref<8x1xf32, #tpu.memory_space<vmem>>, vector<8x1xf32>
      tpu.vector_store %arg9[%c0_76, %c0_77], %119 {strides = array<i32>} : memref<8x1xf32, #tpu.memory_space<vmem>>, vector<8x1xf32>,
      %cst_78 = arith.constant 0.000000e+00 : f32
      %121 = vector.broadcast %cst_78 : f32 to vector<8x1xf32>
      %c0_79 = arith.constant 0 : index
      %c0_80 = arith.constant 0 : index
      %122 = vector.load %arg10[%c0_79, %c0_80] : memref<8x1xf32, #tpu.memory_space<vmem>>, vector<8x1xf32>
      tpu.vector_store %arg10[%c0_79, %c0_80], %121 {strides = array<i32>} : memref<8x1xf32, #tpu.memory_space<vmem>>, vector<8x1xf32>,
    } else {
    }
    %c0 = arith.constant 0 : index
    %c0_1 = arith.constant 0 : index
    %3 = vector.load %arg1[%c0, %c0_1] : memref<8x24xf32, #tpu.memory_space<vmem>>, vector<8x24xf32>
    %c0_2 = arith.constant 0 : index
    %c0_3 = arith.constant 0 : index
    %4 = vector.load %arg2[%c0_2, %c0_3] : memref<8x24xf32, #tpu.memory_space<vmem>>, vector<8x24xf32>
    %cst = arith.constant 0.000000e+00 : f32
    %5 = vector.broadcast %cst : f32 to vector<8x24xf32>
    %6 = arith.cmpf ogt, %4, %5 : vector<8x24xf32>
    %7 = arith.extui %6 : vector<8x24xi1> to vector<8x24xi32>
    %8 = arith.sitofp %7 : vector<8x24xi32> to vector<8x24xf32>
    %cst_4 = arith.constant 0.000000e+00 : f32
    %cst_5 = arith.constant -1.000000e+02 : f32
    %9 = vector.broadcast %cst_4 : f32 to vector<8x24xf32>
    %10 = vector.broadcast %cst_5 : f32 to vector<8x24xf32>
    %11 = arith.select %6, %9, %10 : vector<8x24xi1>, vector<8x24xf32>
    %cst_6 = arith.constant 0.000000e+00 : f32
    %12 = vector.broadcast %cst_6 : f32 to vector<8x24xf32>
    %13 = arith.cmpf oeq, %4, %12 : vector<8x24xf32>
    %cst_7 = arith.constant 0.000000e+00 : f32
    %cst_8 = arith.constant -1.000000e+02 : f32
    %14 = vector.broadcast %cst_7 : f32 to vector<8x24xf32>
    %15 = vector.broadcast %cst_8 : f32 to vector<8x24xf32>
    %16 = arith.select %13, %14, %15 : vector<8x24xi1>, vector<8x24xf32>
    %cst_9 = arith.constant 0.000000e+00 : f32
    %17 = vector.broadcast %cst_9 : f32 to vector<8x24xf32>
    %18 = arith.subf %17, %3 : vector<8x24xf32>
    %cst_10 = arith.constant 2.500000e-01 : f32
    %19 = vector.broadcast %cst_10 : f32 to vector<8x24xf32>
    %20 = arith.mulf %18, %19 : vector<8x24xf32>
    %21 = arith.addf %20, %11 : vector<8x24xf32>
    %cst_11 = arith.constant 1.000000e+00 : f32
    %22 = vector.broadcast %cst_11 : f32 to vector<8x24xf32>
    %23 = arith.mulf %3, %22 : vector<8x24xf32>
    %24 = arith.addf %23, %16 : vector<8x24xf32>
    %cst_12 = arith.constant dense<0xFF800000> : vector<24xf32>
    %25 = vector.multi_reduction <maximumf>, %21, %cst_12 [0] : vector<8x24xf32> to vector<24xf32>
    %26 = vector.shape_cast %25 : vector<24xf32> to vector<1x24xf32>
    %c0_13 = arith.constant 0 : index
    %c0_14 = arith.constant 0 : index
    %27 = vector.load %arg4[%c0_13, %c0_14] : memref<1x24xf32, #tpu.memory_space<vmem>>, vector<1x24xf32>
    %28 = arith.maximumf %27, %26 : vector<1x24xf32>
    %c0_15 = arith.constant 0 : index
    %c0_16 = arith.constant 0 : index
    %29 = vector.load %arg5[%c0_15, %c0_16] : memref<1x24xf32, #tpu.memory_space<vmem>>, vector<1x24xf32>
    %c0_17 = arith.constant 0 : index
    %c0_18 = arith.constant 0 : index
    %30 = vector.load %arg4[%c0_17, %c0_18] : memref<1x24xf32, #tpu.memory_space<vmem>>, vector<1x24xf32>
    %31 = arith.subf %30, %28 : vector<1x24xf32>
    %32 = math.exp %31 : vector<1x24xf32>
    %33 = arith.mulf %29, %32 : vector<1x24xf32>
    %34 = vector.broadcast %28 : vector<1x24xf32> to vector<8x24xf32>
    %35 = arith.subf %21, %34 : vector<8x24xf32>
    %36 = math.exp %35 : vector<8x24xf32>
    %cst_19 = arith.constant dense<0.000000e+00> : vector<24xf32>
    %37 = vector.multi_reduction <add>, %36, %cst_19 [0] : vector<8x24xf32> to vector<24xf32>
    %38 = vector.shape_cast %37 : vector<24xf32> to vector<1x24xf32>
    %39 = arith.addf %33, %38 : vector<1x24xf32>
    %c0_20 = arith.constant 0 : index
    %c0_21 = arith.constant 0 : index
    %40 = vector.load %arg5[%c0_20, %c0_21] : memref<1x24xf32, #tpu.memory_space<vmem>>, vector<1x24xf32>
    tpu.vector_store %arg5[%c0_20, %c0_21], %39 {strides = array<i32>} : memref<1x24xf32, #tpu.memory_space<vmem>>, vector<1x24xf32>,
    %c0_22 = arith.constant 0 : index
    %c0_23 = arith.constant 0 : index
    %41 = vector.load %arg4[%c0_22, %c0_23] : memref<1x24xf32, #tpu.memory_space<vmem>>, vector<1x24xf32>
    tpu.vector_store %arg4[%c0_22, %c0_23], %28 {strides = array<i32>} : memref<1x24xf32, #tpu.memory_space<vmem>>, vector<1x24xf32>,
    %cst_24 = arith.constant dense<0xFF800000> : vector<24xf32>
    %42 = vector.multi_reduction <maximumf>, %24, %cst_24 [0] : vector<8x24xf32> to vector<24xf32>
    %43 = vector.shape_cast %42 : vector<24xf32> to vector<1x24xf32>
    %c0_25 = arith.constant 0 : index
    %c0_26 = arith.constant 0 : index
    %44 = vector.load %arg6[%c0_25, %c0_26] : memref<1x24xf32, #tpu.memory_space<vmem>>, vector<1x24xf32>
    %45 = arith.maximumf %44, %43 : vector<1x24xf32>
    %c0_27 = arith.constant 0 : index
    %c0_28 = arith.constant 0 : index
    %46 = vector.load %arg7[%c0_27, %c0_28] : memref<1x24xf32, #tpu.memory_space<vmem>>, vector<1x24xf32>
    %c0_29 = arith.constant 0 : index
    %c0_30 = arith.constant 0 : index
    %47 = vector.load %arg6[%c0_29, %c0_30] : memref<1x24xf32, #tpu.memory_space<vmem>>, vector<1x24xf32>
    %48 = arith.subf %47, %45 : vector<1x24xf32>
    %49 = math.exp %48 : vector<1x24xf32>
    %50 = arith.mulf %46, %49 : vector<1x24xf32>
    %51 = vector.broadcast %45 : vector<1x24xf32> to vector<8x24xf32>
    %52 = arith.subf %24, %51 : vector<8x24xf32>
    %53 = math.exp %52 : vector<8x24xf32>
    %cst_31 = arith.constant dense<0.000000e+00> : vector<24xf32>
    %54 = vector.multi_reduction <add>, %53, %cst_31 [0] : vector<8x24xf32> to vector<24xf32>
    %55 = vector.shape_cast %54 : vector<24xf32> to vector<1x24xf32>
    %56 = arith.addf %50, %55 : vector<1x24xf32>
    %c0_32 = arith.constant 0 : index
    %c0_33 = arith.constant 0 : index
    %57 = vector.load %arg7[%c0_32, %c0_33] : memref<1x24xf32, #tpu.memory_space<vmem>>, vector<1x24xf32>
    tpu.vector_store %arg7[%c0_32, %c0_33], %56 {strides = array<i32>} : memref<1x24xf32, #tpu.memory_space<vmem>>, vector<1x24xf32>,
    %c0_34 = arith.constant 0 : index
    %c0_35 = arith.constant 0 : index
    %58 = vector.load %arg6[%c0_34, %c0_35] : memref<1x24xf32, #tpu.memory_space<vmem>>, vector<1x24xf32>
    tpu.vector_store %arg6[%c0_34, %c0_35], %45 {strides = array<i32>} : memref<1x24xf32, #tpu.memory_space<vmem>>, vector<1x24xf32>,
    %c0_36 = arith.constant 0 : index
    %c0_37 = arith.constant 0 : index
    %59 = vector.load %arg8[%c0_36, %c0_37] : memref<1x24xf32, #tpu.memory_space<vmem>>, vector<1x24xf32>
    %cst_38 = arith.constant dense<0xFF800000> : vector<24xf32>
    %60 = vector.multi_reduction <maximumf>, %8, %cst_38 [0] : vector<8x24xf32> to vector<24xf32>
    %61 = vector.shape_cast %60 : vector<24xf32> to vector<1x24xf32>
    %62 = arith.maximumf %59, %61 : vector<1x24xf32>
    %c0_39 = arith.constant 0 : index
    %c0_40 = arith.constant 0 : index
    %63 = vector.load %arg8[%c0_39, %c0_40] : memref<1x24xf32, #tpu.memory_space<vmem>>, vector<1x24xf32>
    tpu.vector_store %arg8[%c0_39, %c0_40], %62 {strides = array<i32>} : memref<1x24xf32, #tpu.memory_space<vmem>>, vector<1x24xf32>,
    %cst_41 = arith.constant dense<0xFF800000> : vector<8xf32>
    %64 = vector.multi_reduction <maximumf>, %21, %cst_41 [1] : vector<8x24xf32> to vector<8xf32>
    %65 = vector.shape_cast %64 : vector<8xf32> to vector<8x1xf32>
    %66 = vector.broadcast %65 : vector<8x1xf32> to vector<8x24xf32>
    %67 = arith.subf %21, %66 : vector<8x24xf32>
    %68 = math.exp %67 : vector<8x24xf32>
    %cst_42 = arith.constant dense<0.000000e+00> : vector<8xf32>
    %69 = vector.multi_reduction <add>, %68, %cst_42 [1] : vector<8x24xf32> to vector<8xf32>
    %70 = vector.shape_cast %69 : vector<8xf32> to vector<8x1xf32>
    %71 = math.log %70 : vector<8x1xf32>
    %72 = arith.addf %65, %71 : vector<8x1xf32>
    %cst_43 = arith.constant 4.000000e+00 : f32
    %73 = vector.broadcast %cst_43 : f32 to vector<8x1xf32>
    %74 = arith.mulf %73, %72 : vector<8x1xf32>
    %cst_44 = arith.constant dense<0xFF800000> : vector<8xf32>
    %75 = vector.multi_reduction <maximumf>, %24, %cst_44 [1] : vector<8x24xf32> to vector<8xf32>
    %76 = vector.shape_cast %75 : vector<8xf32> to vector<8x1xf32>
    %77 = vector.broadcast %76 : vector<8x1xf32> to vector<8x24xf32>
    %78 = arith.subf %24, %77 : vector<8x24xf32>
    %79 = math.exp %78 : vector<8x24xf32>
    %cst_45 = arith.constant dense<0.000000e+00> : vector<8xf32>
    %80 = vector.multi_reduction <add>, %79, %cst_45 [1] : vector<8x24xf32> to vector<8xf32>
    %81 = vector.shape_cast %80 : vector<8xf32> to vector<8x1xf32>
    %82 = math.log %81 : vector<8x1xf32>
    %83 = arith.addf %76, %82 : vector<8x1xf32>
    %cst_46 = arith.constant 1.000000e+00 : f32
    %84 = vector.broadcast %cst_46 : f32 to vector<8x1xf32>
    %85 = arith.mulf %84, %83 : vector<8x1xf32>
    %cst_47 = arith.constant dense<0xFF800000> : vector<8xf32>
    %86 = vector.multi_reduction <maximumf>, %8, %cst_47 [1] : vector<8x24xf32> to vector<8xf32>
    %87 = vector.shape_cast %86 : vector<8xf32> to vector<8x1xf32>
    %c0_48 = arith.constant 0 : index
    %c0_49 = arith.constant 0 : index
    %88 = vector.load %arg9[%c0_48, %c0_49] : memref<8x1xf32, #tpu.memory_space<vmem>>, vector<8x1xf32>
    %89 = arith.addf %85, %74 : vector<8x1xf32>
    %cst_50 = arith.constant 0.000000e+00 : f32
    %90 = vector.broadcast %cst_50 : f32 to vector<8x1xf32>
    %91 = arith.maximumf %89, %90 : vector<8x1xf32>
    %92 = math.absf %89 : vector<8x1xf32>
    %cst_51 = arith.constant 0.000000e+00 : f32
    %93 = vector.broadcast %cst_51 : f32 to vector<8x1xf32>
    %94 = arith.subf %93, %92 : vector<8x1xf32>
    %95 = math.exp %94 : vector<8x1xf32>
    %cst_52 = arith.constant 1.000000e+00 : f32
    %96 = vector.broadcast %cst_52 : f32 to vector<8x1xf32>
    %97 = arith.addf %96, %95 : vector<8x1xf32>
    %98 = math.log %97 : vector<8x1xf32>
    %99 = arith.addf %91, %98 : vector<8x1xf32>
    %100 = arith.mulf %87, %99 : vector<8x1xf32>
    %101 = arith.addf %88, %100 : vector<8x1xf32>
    %c0_53 = arith.constant 0 : index
    %c0_54 = arith.constant 0 : index
    %102 = vector.load %arg9[%c0_53, %c0_54] : memref<8x1xf32, #tpu.memory_space<vmem>>, vector<8x1xf32>
    tpu.vector_store %arg9[%c0_53, %c0_54], %101 {strides = array<i32>} : memref<8x1xf32, #tpu.memory_space<vmem>>, vector<8x1xf32>,
    %c0_55 = arith.constant 0 : index
    %c0_56 = arith.constant 0 : index
    %103 = vector.load %arg10[%c0_55, %c0_56] : memref<8x1xf32, #tpu.memory_space<vmem>>, vector<8x1xf32>
    %104 = arith.addf %103, %87 : vector<8x1xf32>
    %c0_57 = arith.constant 0 : index
    %c0_58 = arith.constant 0 : index
    %105 = vector.load %arg10[%c0_57, %c0_58] : memref<8x1xf32, #tpu.memory_space<vmem>>, vector<8x1xf32>
    tpu.vector_store %arg10[%c0_57, %c0_58], %104 {strides = array<i32>} : memref<8x1xf32, #tpu.memory_space<vmem>>, vector<8x1xf32>,
    %c3_i32 = arith.constant 3 : i32
    %106 = arith.cmpi eq, %arg0, %c3_i32 : i32
    %107 = arith.extui %106 : i1 to i32
    %c0_i32_59 = arith.constant 0 : i32
    %108 = arith.cmpi ne, %107, %c0_i32_59 : i32
    scf.if %108 {
      %c0_60 = arith.constant 0 : index
      %c0_61 = arith.constant 0 : index
      %109 = vector.load %arg4[%c0_60, %c0_61] : memref<1x24xf32, #tpu.memory_space<vmem>>, vector<1x24xf32>
      %c0_62 = arith.constant 0 : index
      %c0_63 = arith.constant 0 : index
      %110 = vector.load %arg5[%c0_62, %c0_63] : memref<1x24xf32, #tpu.memory_space<vmem>>, vector<1x24xf32>
      %111 = math.log %110 : vector<1x24xf32>
      %112 = arith.addf %109, %111 : vector<1x24xf32>
      %cst_64 = arith.constant 4.000000e+00 : f32
      %113 = vector.broadcast %cst_64 : f32 to vector<1x24xf32>
      %114 = arith.mulf %113, %112 : vector<1x24xf32>
      %c0_65 = arith.constant 0 : index
      %c0_66 = arith.constant 0 : index
      %115 = vector.load %arg6[%c0_65, %c0_66] : memref<1x24xf32, #tpu.memory_space<vmem>>, vector<1x24xf32>
      %c0_67 = arith.constant 0 : index
      %c0_68 = arith.constant 0 : index
      %116 = vector.load %arg7[%c0_67, %c0_68] : memref<1x24xf32, #tpu.memory_space<vmem>>, vector<1x24xf32>
      %117 = math.log %116 : vector<1x24xf32>
      %118 = arith.addf %115, %117 : vector<1x24xf32>
      %cst_69 = arith.constant 1.000000e+00 : f32
      %119 = vector.broadcast %cst_69 : f32 to vector<1x24xf32>
      %120 = arith.mulf %119, %118 : vector<1x24xf32>
      %c0_70 = arith.constant 0 : index
      %c0_71 = arith.constant 0 : index
      %121 = vector.load %arg8[%c0_70, %c0_71] : memref<1x24xf32, #tpu.memory_space<vmem>>, vector<1x24xf32>
      %122 = arith.addf %120, %114 : vector<1x24xf32>
      %cst_72 = arith.constant 0.000000e+00 : f32
      %123 = vector.broadcast %cst_72 : f32 to vector<1x24xf32>
      %124 = arith.maximumf %122, %123 : vector<1x24xf32>
      %125 = math.absf %122 : vector<1x24xf32>
      %cst_73 = arith.constant 0.000000e+00 : f32
      %126 = vector.broadcast %cst_73 : f32 to vector<1x24xf32>
      %127 = arith.subf %126, %125 : vector<1x24xf32>
      %128 = math.exp %127 : vector<1x24xf32>
      %cst_74 = arith.constant 1.000000e+00 : f32
      %129 = vector.broadcast %cst_74 : f32 to vector<1x24xf32>
      %130 = arith.addf %129, %128 : vector<1x24xf32>
      %131 = math.log %130 : vector<1x24xf32>
      %132 = arith.addf %124, %131 : vector<1x24xf32>
      %133 = arith.mulf %121, %132 : vector<1x24xf32>
      %cst_75 = arith.constant dense<0.000000e+00> : vector<1xf32>
      %134 = vector.multi_reduction <add>, %133, %cst_75 [1] : vector<1x24xf32> to vector<1xf32>
      %135 = vector.shape_cast %134 : vector<1xf32> to vector<1x1xf32>
      %cst_76 = arith.constant dense<0.000000e+00> : vector<1xf32>
      %136 = vector.multi_reduction <add>, %121, %cst_76 [1] : vector<1x24xf32> to vector<1xf32>
      %137 = vector.shape_cast %136 : vector<1xf32> to vector<1x1xf32>
      %c0_77 = arith.constant 0 : index
      %c0_78 = arith.constant 0 : index
      %138 = vector.load %arg9[%c0_77, %c0_78] : memref<8x1xf32, #tpu.memory_space<vmem>>, vector<8x1xf32>
      %cst_79 = arith.constant dense<0.000000e+00> : vector<1xf32>
      %139 = vector.multi_reduction <add>, %138, %cst_79 [0] : vector<8x1xf32> to vector<1xf32>
      %140 = vector.shape_cast %139 : vector<1xf32> to vector<1x1xf32>
      %c0_80 = arith.constant 0 : index
      %c0_81 = arith.constant 0 : index
      %141 = vector.load %arg10[%c0_80, %c0_81] : memref<8x1xf32, #tpu.memory_space<vmem>>, vector<8x1xf32>
      %cst_82 = arith.constant dense<0.000000e+00> : vector<1xf32>
      %142 = vector.multi_reduction <add>, %141, %cst_82 [0] : vector<8x1xf32> to vector<1xf32>
      %143 = vector.shape_cast %142 : vector<1xf32> to vector<1x1xf32>
      %144 = arith.divf %135, %137 : vector<1x1xf32>
      %145 = arith.divf %140, %143 : vector<1x1xf32>
      %146 = arith.addf %144, %145 : vector<1x1xf32>
      %c0_83 = arith.constant 0 : index
      %c0_84 = arith.constant 0 : index
      %147 = vector.load %arg3[%c0_83, %c0_84] : memref<1x1xf32, #tpu.memory_space<vmem>>, vector<1x1xf32>
      tpu.vector_store %arg3[%c0_83, %c0_84], %146 {strides = array<i32>} : memref<1x1xf32, #tpu.memory_space<vmem>>, vector<1x1xf32>,
    } else {
    }
    return
  }
  func.func @transform_0(%arg0: i32) -> (i32, i32) {
    %c0_i32 = arith.constant 0 : i32
    %c0_i32_0 = arith.constant 0 : i32
    return %arg0, %c0_i32 : i32, i32
  }
  func.func @transform_1(%arg0: i32) -> (i32, i32) {
    %c0_i32 = arith.constant 0 : i32
    %c0_i32_0 = arith.constant 0 : i32
    return %arg0, %c0_i32 : i32, i32
  }
  func.func @transform_2(%arg0: i32) -> (i32, i32) {
    %c0_i32 = arith.constant 0 : i32
    %c0_i32_0 = arith.constant 0 : i32
    %c0_i32_1 = arith.constant 0 : i32
    return %c0_i32, %c0_i32_0 : i32, i32
  }
}

</mosaic_0001>

<llo_original>
// kernel: tpu_custom_call.1
$region0: #{tpu_custom_call.1}
  #allocation0 [shape = 'u32[]', space=smem, size = 0x4, offset = 0x4, fixed_abs, tag = 'smem constant byte address 0x4 - core index']
  #allocation1 [shape = 'u32[144,128]{1,0:T(1,128)}', space=vmem, size = 0x12000, scoped, tag = 'internal scratch']
  #allocation2 [shape = 'f32[1,24]{1,0:T(1,128)}', space=vmem, size = 0x200, scoped, tag = 'scratch operand']
  #allocation3 [shape = 'f32[1,24]{1,0:T(1,128)}', space=vmem, size = 0x200, scoped, tag = 'scratch operand']
  #allocation4 [shape = 'f32[1,24]{1,0:T(1,128)}', space=vmem, size = 0x200, scoped, tag = 'scratch operand']
  #allocation5 [shape = 'f32[1,24]{1,0:T(1,128)}', space=vmem, size = 0x200, scoped, tag = 'scratch operand']
  #allocation6 [shape = 'f32[1,24]{1,0:T(1,128)}', space=vmem, size = 0x200, scoped, tag = 'scratch operand']
  #allocation7 [shape = 'f32[8,1]{1,0:T(8,128)}', space=vmem, size = 0x1000, scoped, tag = 'scratch operand']
  #allocation8 [shape = 'f32[8,1]{1,0:T(8,128)}', space=vmem, size = 0x1000, scoped, tag = 'scratch operand']
  %s0 = inlined_call_operand.vmem [shape: f32[32,24], index: 0, kind: input, shape index: {}]
  %s1 = inlined_call_operand.vmem [shape: f32[32,24], index: 1, kind: input, shape index: {}]
  %s2 = inlined_call_operand.hbm [shape: f32[1,1], index: 2, kind: output, shape index: {}]
  %s3 = sld [smem:[#allocation0]]
  $region49: #{tpu_custom_call.1} parent=0
    _
  %s5 = ssub.s32 1, %s3
  %s6 = scalar_select 0, %s5, %s3
  $region1: #{tpu_custom_call.1} parent=0
    #allocation9 [shape = 'u8[512]{0}', space=vmem, size = 0x400, scoped, tag = 'output window, operand 0, single buffered']
    #allocation10 [shape = 's32[2]{0}', space=sflag, size = 0x8, scoped, tag = 'scoped memory for tpu_custom_call.1']
    %7 = vsyncpa [#allocation10], 0
    loop: start=0, step=1, limit=6
    $region2: #{tpu_custom_call.1} parent=1 // loop_pre_header
      _
    $region3: #{tpu_custom_call.1} parent=1 // loop_header
      %s9 = sphi 0, %s13
      %p10 = scmp.ge.s32.totalorder %s9, 6
      %s19 = sphi 0, %s21
      %s22 = sphi 0, %s19
      %s23 = sphi 0, %s22
      %s39 = sphi 0, %s23
      %s45 = sphi 0, %s47
      %s48 = sphi 0, %s45
      %s49 = sphi 0, %s48
      %s65 = sphi 0, %s49
      %s69 = sphi 0, %s69
      %s71 = sphi 0, %s69
      %s72 = sphi 0, %s71
      %s86 = sphi 0, %s72
    $region4: #{tpu_custom_call.1} parent=1 // loop_header_branch
      %12 = sbr.rel (%p10) target = $region8
    $region5: #{tpu_custom_call.1} parent=1 // loop_body
      %s14 = ssub.s32 %s9, 1
      %s15 = ssub.s32 %s9, 2
      %s16 = sadd.s32 %s9, 1
      %s17 = ssub.s32 %s9, %s16
      %p18 = scmp.eq.s32.totalorder %s17, 0
      %s20 = sadd.s32 %s19, 1
      %s21 = scalar_select %p18, %s19, %s20
      %p24 = pneg %p18
      %p25 = scmp.eq.s32.totalorder %s9, 3
      %p26 = por %p24, %p25
      %p27 = scmp.ne.s32.totalorder %s19, %s22
      %p28 = scmp.eq.s32.totalorder %s9, 0
      %p29 = por %p27, %p28
      %p30 = scmp.ne.s32.totalorder %s19, %s22
      %p31 = scmp.eq.s32.totalorder %s14, 3
      %p32 = por %p30, %p31
      %p33 = scmp.ne.s32.totalorder %s22, %s23
      %p34 = scmp.eq.s32.totalorder %s14, 0
      %p35 = por %p33, %p34
      %p36 = scmp.ne.s32.totalorder %s22, %s23
      %p37 = scmp.eq.s32.totalorder %s15, 3
      %p38 = por %p36, %p37
      %p40 = scmp.ne.s32.totalorder %s23, %s39
      %p41 = scmp.eq.s32.totalorder %s15, 0
      %p42 = por %p40, %p41
      %s43 = ssub.s32 %s9, %s16
      %p44 = scmp.eq.s32.totalorder %s43, 0
      %s46 = sadd.s32 %s45, 1
      %s47 = scalar_select %p44, %s45, %s46
      %p50 = pneg %p44
      %p51 = scmp.eq.s32.totalorder %s9, 3
      %p52 = por %p50, %p51
      %p53 = scmp.ne.s32.totalorder %s45, %s48
      %p54 = scmp.eq.s32.totalorder %s9, 0
      %p55 = por %p53, %p54
      %p56 = scmp.ne.s32.totalorder %s45, %s48
      %p57 = scmp.eq.s32.totalorder %s14, 3
      %p58 = por %p56, %p57
      %p59 = scmp.ne.s32.totalorder %s48, %s49
      %p60 = scmp.eq.s32.totalorder %s14, 0
      %p61 = por %p59, %p60
      %p62 = scmp.ne.s32.totalorder %s48, %s49
      %p63 = scmp.eq.s32.totalorder %s15, 3
      %p64 = por %p62, %p63
      %p66 = scmp.ne.s32.totalorder %s49, %s65
      %p67 = scmp.eq.s32.totalorder %s15, 0
      %p68 = por %p66, %p67
      %s70 = sadd.s32 %s69, 1
      %p73 = scmp.eq.s32.totalorder %s9, 3
      %p74 = scmp.ne.s32.totalorder %s69, %s71
      %p75 = scmp.eq.s32.totalorder %s9, 0
      %p76 = por %p74, %p75
      %p77 = scmp.ne.s32.totalorder %s69, %s71
      %p78 = scmp.eq.s32.totalorder %s14, 3
      %p79 = por %p77, %p78
      %p80 = scmp.ne.s32.totalorder %s71, %s72
      %p81 = scmp.eq.s32.totalorder %s14, 0
      %p82 = por %p80, %p81
      %p83 = scmp.ne.s32.totalorder %s71, %s72
      %p84 = scmp.eq.s32.totalorder %s15, 3
      %p85 = por %p83, %p84
      %p87 = scmp.ne.s32.totalorder %s72, %s86
      %p88 = scmp.eq.s32.totalorder %s15, 0
      %p89 = por %p87, %p88
      %p90 = scmp.le.s32.totalorder 1, %s9
      %p91 = scmp.lt.s32.totalorder %s9, 5
      %p92 = pnand %p90, %p91
      %p93 = pneg %p92
      // Predicated region
      $region9: #{tpu_custom_call.1} parent=5 // pred_check
        _
      $region10: #{tpu_custom_call.1} parent=5 // pred_check_branch
        %95 = sbr.rel (%p92) target = $region12
      $region11: #{tpu_custom_call.1} parent=5 // pred_region
        %s96 = ssub.s32 %s9, 1
      $region12: #{tpu_custom_call.1} parent=5 // pred_fallthru
        _
      %p97 = scmp.lt.s32.totalorder %s9, 4
      // Predicated region
      $region13: #{tpu_custom_call.1} parent=5 // pred_check
        %p98 = pneg %p97
      $region14: #{tpu_custom_call.1} parent=5 // pred_check_branch
        %100 = sbr.rel (%p98) target = $region16
      $region15: #{tpu_custom_call.1} parent=5 // pred_region
        // Predicated region
        $region17: #{tpu_custom_call.1} parent=15 // pred_check
          %p101 = pneg %p29
        $region18: #{tpu_custom_call.1} parent=15 // pred_check_branch
          %103 = sbr.rel (%p101) target = $region20
        $region19: #{tpu_custom_call.1} parent=15 // pred_region
          %p104 = scmp.lt.s32.totalorder %s9, 3
          %s105 = scalar_select %p104, %s9, 3
          %s106 = smul.addr %s105, 8
          %s107 = scalar_lea.vmem %s0, %s106
        $region20: #{tpu_custom_call.1} parent=15 // pred_fallthru
          _
        // Predicated region
        $region21: #{tpu_custom_call.1} parent=15 // pred_check
          %p108 = pneg %p55
        $region22: #{tpu_custom_call.1} parent=15 // pred_check_branch
          %110 = sbr.rel (%p108) target = $region24
        $region23: #{tpu_custom_call.1} parent=15 // pred_region
          %p111 = scmp.lt.s32.totalorder %s9, 3
          %s112 = scalar_select %p111, %s9, 3
          %s113 = smul.addr %s112, 8
          %s114 = scalar_lea.vmem %s1, %s113
        $region24: #{tpu_custom_call.1} parent=15 // pred_fallthru
          _
      $region16: #{tpu_custom_call.1} parent=5 // pred_fallthru
        _
      %p115 = scmp.le.s32.totalorder 1, %s9
      %p116 = scmp.lt.s32.totalorder %s9, 5
      %p117 = pnand %p115, %p116
      %p118 = pneg %p117
      // Predicated region
      $region25: #{tpu_custom_call.1} parent=5 // pred_check
        _
      $region26: #{tpu_custom_call.1} parent=5 // pred_check_branch
        %120 = sbr.rel (%p117) target = $region28
      $region27: #{tpu_custom_call.1} parent=5 // pred_region
        %s121 = ssub.s32 %s9, 1
        %p122 = scmp.lt.s32.totalorder %s14, 3
        %s123 = scalar_select %p122, %s14, 3
        %s124 = smul.addr %s123, 8
        %s125 = scalar_lea.vmem %s0, %s124
        %p126 = pneg %p35
        %p127 = pneg %p32
        %p128 = scmp.lt.s32.totalorder %s14, 3
        %s129 = scalar_select %p128, %s14, 3
        %s130 = smul.addr %s129, 8
        %s131 = scalar_lea.vmem %s1, %s130
        %p132 = pneg %p61
        %p133 = pneg %p58
        %p134 = pneg %p82
        %p135 = pneg %p79
        %p136 = scmp.lt.s32.totalorder %s14, 3
        %s137 = scalar_select %p136, %s14, 3
        %s138 = smul.addr %s137, 8
        %s139 = scalar_lea.vmem %s0, %s138
        %p140 = scmp.lt.s32.totalorder %s14, 3
        %s141 = scalar_select %p140, %s14, 3
        %s142 = smul.addr %s141, 8
        %s143 = scalar_lea.vmem %s1, %s142
        %p144 = scmp.eq.s32.totalorder %s14, 0
        // Predicated region
        $region29: #{tpu_custom_call.1} parent=27 // pred_check
          %p145 = pneg %p144
        $region30: #{tpu_custom_call.1} parent=27 // pred_check_branch
          %147 = sbr.rel (%p145) target = $region32
        $region31: #{tpu_custom_call.1} parent=27 // pred_region
          %vm148 = vcmask 188416
          %149 = vst.msk [vmem:[#allocation2] sm:$0x1] %vm148, -1e+30
          %150 = vst.msk [vmem:[#allocation4] sm:$0x1] %vm148, -1e+30
          %151 = vst.msk [vmem:[#allocation3] sm:$0x1] %vm148, 0.0
          %152 = vst.msk [vmem:[#allocation5] sm:$0x1] %vm148, 0.0
          %153 = vst.msk [vmem:[#allocation6] sm:$0x1] %vm148, 0.0
          %vm154 = vcmask 7168
          %155 = vst.msk [vmem:[#allocation7] sm:$0xff] %vm154, 0.0
          %156 = vst.msk [vmem:[#allocation8] sm:$0xff] %vm154, 0.0
        $region32: #{tpu_custom_call.1} parent=27 // pred_fallthru
          _
        %v157 = vld [vmem:[%s139] sm:$0xff]
        %v158 = vld [vmem:[%s143] sm:$0xff]
        %vm159 = vcmp.gt.f32.partialorder %v158, 0.0
        %v160 = vsel %vm159, 1, 0
        %v161 = vcvt.s32.f32 %v160
        %v162 = vsel %vm159, 0.0, -100.0
        %vm163 = vcmp.eq.f32.partialorder %v158, 0.0
        %v164 = vsel %vm163, 0.0, -100.0
        %v165 = vsub.f32 0.0, %v157
        %v166 = vmul.f32 %v165, 0.25
        %v167 = vadd.f32 %v166, %v162
        %v168 = vadd.f32 %v157, %v164
        %vm169 = vcmask 195584
        %v170 = vsel %vm169, %v167, -inf
        %v171 = vrot.slane %v170, 4
        %v172 = vmax.f32 %v170, %v171
        %v173 = vrot.slane %v172, 2
        %v174 = vmax.f32 %v172, %v173
        %v175 = vrot.slane %v174, 1
        %v176 = vmax.f32 %v174, %v175
        %v177 = vld [vmem:[#allocation2] sm:$0x1]
        %v178 = vmax.f32 %v177, %v176
        %v179 = vld [vmem:[#allocation3] sm:$0x1]
        %v180 = vsub.f32 %v177, %v178
        %v181 = vmul.f32 %v180, 1.442695
        %v182 = vpow.pop %v181
        %v183 = vmul.f32 %v179, %v182
        %v185 = vlaneseq
        %v186 = vshrl.u32 %v185, 7
        %v187 = vsub.s32 0, %v186
        %v188 = vrot.slane %v178, %v187
        %v190 = vsub.f32 %v167, %v188
        %v191 = vmul.f32 %v190, 1.442695
        %v192 = vpow.pop %v191
        %v193 = vsel %vm169, %v192, 0.0
        %v194 = vrot.slane %v193, 4
        %v195 = vadd.f32 %v193, %v194
        %v196 = vrot.slane %v195, 2
        %v197 = vadd.f32 %v195, %v196
        %v198 = vrot.slane %v197, 1
        %v199 = vadd.f32 %v197, %v198
        %v200 = vadd.f32 %v183, %v199
        %vm201 = vcmask 188416
        %202 = vst.msk [vmem:[#allocation3] sm:$0x1] %vm201, %v200
        %203 = vst.msk [vmem:[#allocation2] sm:$0x1] %vm201, %v178
        %v204 = vsel %vm169, %v168, -inf
        %v205 = vrot.slane %v204, 4
        %v206 = vmax.f32 %v204, %v205
        %v207 = vrot.slane %v206, 2
        %v208 = vmax.f32 %v206, %v207
        %v209 = vrot.slane %v208, 1
        %v210 = vmax.f32 %v208, %v209
        %v211 = vld [vmem:[#allocation4] sm:$0x1]
        %v212 = vmax.f32 %v211, %v210
        %v213 = vld [vmem:[#allocation5] sm:$0x1]
        %v214 = vsub.f32 %v211, %v212
        %v215 = vmul.f32 %v214, 1.442695
        %v216 = vpow.pop %v215
        %v217 = vmul.f32 %v213, %v216
        %v219 = vlaneseq
        %v220 = vshrl.u32 %v219, 7
        %v221 = vsub.s32 0, %v220
        %v222 = vrot.slane %v212, %v221
        %v224 = vsub.f32 %v168, %v222
        %v225 = vmul.f32 %v224, 1.442695
        %v226 = vpow.pop %v225
        %v227 = vsel %vm169, %v226, 0.0
        %v228 = vrot.slane %v227, 4
        %v229 = vadd.f32 %v227, %v228
        %v230 = vrot.slane %v229, 2
        %v231 = vadd.f32 %v229, %v230
        %v232 = vrot.slane %v231, 1
        %v233 = vadd.f32 %v231, %v232
        %v234 = vadd.f32 %v217, %v233
        %235 = vst.msk [vmem:[#allocation5] sm:$0x1] %vm201, %v234
        %236 = vst.msk [vmem:[#allocation4] sm:$0x1] %vm201, %v212
        %v237 = vld [vmem:[#allocation6] sm:$0x1]
        %v238 = vsel %vm169, %v161, -inf
        %v239 = vrot.slane %v238, 4
        %v240 = vmax.f32 %v238, %v239
        %v241 = vrot.slane %v240, 2
        %v242 = vmax.f32 %v240, %v241
        %v243 = vrot.slane %v242, 1
        %v244 = vmax.f32 %v242, %v243
        %v245 = vmax.f32 %v237, %v244
        %246 = vst.msk [vmem:[#allocation6] sm:$0x1] %vm201, %v245
        %247 = vmax.xlane.f32.xlu0 %v170
        %v248 = vpop.xlane.xlu0 %247
        %v249 = vsub.f32 %v167, %v248
        %v250 = vmul.f32 %v249, 1.442695
        %v251 = vpow.pop %v250
        %v252 = vsel %vm169, %v251, 0.0
        %253 = vadd.xlane.f32.xlu0 %v252
        %v254 = vpop.xlane.xlu0 %253
        %v255 = vlog2.pop %v254
        %v256 = vmul.f32 %v255, 0.6931472
        %v257 = vadd.f32 %v248, %v256
        %v258 = vmul.f32 %v257, 4.0
        %259 = vmax.xlane.f32.xlu0 %v204
        %v260 = vpop.xlane.xlu0 %259
        %v261 = vsub.f32 %v168, %v260
        %v262 = vmul.f32 %v261, 1.442695
        %v263 = vpow.pop %v262
        %v264 = vsel %vm169, %v263, 0.0
        %265 = vadd.xlane.f32.xlu0 %v264
        %v266 = vpop.xlane.xlu0 %265
        %v267 = vlog2.pop %v266
        %v268 = vmul.f32 %v267, 0.6931472
        %v269 = vadd.f32 %v260, %v268
        %270 = vmax.xlane.f32.xlu0 %v238
        %v271 = vpop.xlane.xlu0 %270
        %v272 = vld [vmem:[#allocation7] sm:$0xff]
        %v273 = vadd.f32 %v269, %v258
        %v274 = vmax.f32 %v273, 0.0
        %v275 = vand.u32 2147483647, %v273
        %v276 = vsub.f32 0.0, %v275
        %v277 = vmul.f32 %v276, 1.442695
        %v278 = vpow.pop %v277
        %v279 = vadd.f32 %v278, 1.0
        %v280 = vlog2.pop %v279
        %v281 = vmul.f32 %v280, 0.6931472
        %v282 = vadd.f32 %v274, %v281
        %v283 = vmul.f32 %v271, %v282
        %v284 = vadd.f32 %v272, %v283
        %vm285 = vcmask 7168
        %286 = vst.msk [vmem:[#allocation7] sm:$0xff] %vm285, %v284
        %v287 = vld [vmem:[#allocation8] sm:$0xff]
        %v288 = vadd.f32 %v287, %v271
        %289 = vst.msk [vmem:[#allocation8] sm:$0xff] %vm285, %v288
        %p290 = scmp.eq.s32.totalorder %s14, 3
        // Predicated region
        $region33: #{tpu_custom_call.1} parent=27 // pred_check
          %p291 = pneg %p290
        $region34: #{tpu_custom_call.1} parent=27 // pred_check_branch
          %293 = sbr.rel (%p291) target = $region36
        $region35: #{tpu_custom_call.1} parent=27 // pred_region
          %v294 = vld [vmem:[#allocation2] sm:$0x1]
          %v295 = vld [vmem:[#allocation3] sm:$0x1]
          %v296 = vlog2.pop %v295
          %v297 = vmul.f32 %v296, 0.6931472
          %v298 = vadd.f32 %v294, %v297
          %v299 = vmul.f32 %v298, 4.0
          %v300 = vld [vmem:[#allocation4] sm:$0x1]
          %v301 = vld [vmem:[#allocation5] sm:$0x1]
          %v302 = vlog2.pop %v301
          %v303 = vmul.f32 %v302, 0.6931472
          %v304 = vadd.f32 %v300, %v303
          %v305 = vld [vmem:[#allocation6] sm:$0x1]
          %v306 = vadd.f32 %v304, %v299
          %v307 = vmax.f32 %v306, 0.0
          %v308 = vand.u32 2147483647, %v306
          %v309 = vsub.f32 0.0, %v308
          %v310 = vmul.f32 %v309, 1.442695
          %v311 = vpow.pop %v310
          %v312 = vadd.f32 %v311, 1.0
          %v313 = vlog2.pop %v312
          %v314 = vmul.f32 %v313, 0.6931472
          %v315 = vadd.f32 %v307, %v314
          %v316 = vmul.f32 %v305, %v315
          %v317 = vsel %vm201, %v316, 0.0
          %318 = vadd.xlane.f32.xlu0 %v317
          %v319 = vpop.xlane.xlu0 %318
          %v320 = vsel %vm201, %v305, 0.0
          %321 = vadd.xlane.f32.xlu0 %v320
          %v322 = vpop.xlane.xlu0 %321
          %v323 = vld [vmem:[#allocation7] sm:$0xff]
          %v324 = vsel %vm285, %v323, 0.0
          %v325 = vrot.slane %v324, 4
          %v326 = vadd.f32 %v324, %v325
          %v327 = vrot.slane %v326, 2
          %v328 = vadd.f32 %v326, %v327
          %v329 = vrot.slane %v328, 1
          %v330 = vadd.f32 %v328, %v329
          %v331 = vld [vmem:[#allocation8] sm:$0xff]
          %v332 = vsel %vm285, %v331, 0.0
          %v333 = vrot.slane %v332, 4
          %v334 = vadd.f32 %v332, %v333
          %v335 = vrot.slane %v334, 2
          %v336 = vadd.f32 %v334, %v335
          %v337 = vrot.slane %v336, 1
          %v338 = vadd.f32 %v336, %v337
          %v339 = vrcp.pop %v322
          %v340 = vmul.f32 %v319, %v339
          %v341 = vrcp.pop %v338
          %v342 = vmul.f32 %v330, %v341
          %v343 = vadd.f32 %v340, %v342
          %vm344 = vcmask 0
          %345 = vst.msk [vmem:[#allocation9] sm:$0x1] %vm344, %v343
        $region36: #{tpu_custom_call.1} parent=27 // pred_fallthru
          _
        // Predicated region
        $region37: #{tpu_custom_call.1} parent=27 // pred_check
          %p346 = pneg %p79
        $region38: #{tpu_custom_call.1} parent=27 // pred_check_branch
          %348 = sbr.rel (%p346) target = $region40
        $region39: #{tpu_custom_call.1} parent=27 // pred_region
          %s350 = ssub.s32 16, 16
          %351 = vsyncadd [#allocation10], %s350
          %s353 = sshll.u32 [#allocation9], 4
          %s354 = int_to_ptr.vmem [resolvable:$true] %s353
          %356 = dma.vmem_to_hbm [thread:$0]  %s354, 16, %s2, [#allocation10]
        $region40: #{tpu_custom_call.1} parent=27 // pred_fallthru
          _
        // Predicated region
        $region41: #{tpu_custom_call.1} parent=27 // pred_check
          %p357 = pneg %p79
        $region42: #{tpu_custom_call.1} parent=27 // pred_check_branch
          %359 = sbr.rel (%p357) target = $region44
        $region43: #{tpu_custom_call.1} parent=27 // pred_region
          %360 = dma.done [#allocation10], 16
        $region44: #{tpu_custom_call.1} parent=27 // pred_fallthru
          _
      $region28: #{tpu_custom_call.1} parent=5 // pred_fallthru
        _
      %p361 = scmp.le.s32.totalorder 2, %s9
      // Predicated region
      $region45: #{tpu_custom_call.1} parent=5 // pred_check
        %p362 = pneg %p361
      $region46: #{tpu_custom_call.1} parent=5 // pred_check_branch
        %364 = sbr.rel (%p362) target = $region48
      $region47: #{tpu_custom_call.1} parent=5 // pred_region
        %s365 = ssub.s32 %s9, 2
      $region48: #{tpu_custom_call.1} parent=5 // pred_fallthru
        _
    $region6: #{tpu_custom_call.1} parent=1 // loop_footer
      %s13 = sadd.s32 1, %s9
    $region7: #{tpu_custom_call.1} parent=1 // loop_footer_branch
      %8 = sbr.rel target = $region3
    $region8: #{tpu_custom_call.1} parent=1 // loop_exit
      _
    %366 = vsyncpa [#allocation10], 1
    %s367 = scalar_lea.sflag [#allocation10], 1
    %368 = vsyncpa %s367, 1

</llo_original>
